<compile_context>
chip_gen: v7x
topology: tpu7x:2x2x1
jax: 0.10.0
libtpu: 0.0.40
codegen_flags: <defaults>
</compile_context>

<pallas_src>
import functools

import jax
import jax.numpy as jnp
from jax import lax
from jax.experimental import pallas as pl
from jax.experimental.pallas import tpu as pltpu

HIDDEN = 40
LANE = 128
CHUNK = 512  # lanes per in-kernel chunk: [40, 512] intermediates ~= 20 vregs


def _round_up(a, b):
    return ((a + b - 1) // b) * b


def _mlp_kernel(x_ref, wcol_ref, w2_ref, w3p_ref, b3_ref, o_ref, *, chunk, n_chunks):
    # Resident weights (block index is grid-invariant -> DMA'd once).
    w1 = wcol_ref[:, 0:1]          # [40, 1]
    b1 = wcol_ref[:, 1:2]          # [40, 1]
    b2 = wcol_ref[:, 2:3]          # [40, 1]
    w2 = w2_ref[...]               # [40, 40]   (PyTorch [out, in] layout, used as W2 @ h1)
    w3p = w3p_ref[...]             # [8, 40]    (row 0 = w3, rows 1..7 = 0)
    b3 = b3_ref[...]               # [1, 1]

    def body(c, carry):
        off = pl.multiple_of(c * chunk, chunk)
        x = x_ref[:, pl.ds(off, chunk)]                          # [1, chunk]
        # Layer 1: Linear(1 -> 40) + ReLU as a VPU broadcast (K = 1).
        h1 = jnp.maximum(w1 * x + b1, 0.0)                       # [40, chunk]
        # Layer 2: Linear(40 -> 40) + ReLU on the MXU.
        h2 = jnp.dot(w2, h1, preferred_element_type=jnp.float32)
        h2 = jnp.maximum(h2 + b2, 0.0)                           # [40, chunk]
        # Layer 3: Linear(40 -> 1) as a second (sublane-aligned M=8) MXU matmul.
        o8 = jnp.dot(w3p, h2, preferred_element_type=jnp.float32)  # [8, chunk]
        o_ref[:, pl.ds(off, chunk)] = o8[0:1, :] + b3            # [1, chunk]
        return carry

    lax.fori_loop(0, n_chunks, body, 0, unroll=True)


def prepare_params(params):
    """Once-per-weight-set conversion from PyTorch layout (W:[out,in], b:[out])
    to the kernel layout.  Hoisted out of the forward call."""
    w1 = params["w1"].astype(jnp.float32).reshape(HIDDEN, 1)
    b1 = params["b1"].astype(jnp.float32).reshape(HIDDEN, 1)
    w2 = params["w2"].astype(jnp.float32)                        # [40, 40]
    b2 = params["b2"].astype(jnp.float32).reshape(HIDDEN, 1)
    w3 = params["w3"].astype(jnp.float32).reshape(1, HIDDEN)     # [1, 40]
    b3 = params["b3"].astype(jnp.float32).reshape(1, 1)
    wcol = jnp.concatenate([w1, b1, b2], axis=1)                 # [40, 3]
    w3p = jnp.concatenate([w3, jnp.zeros((7, HIDDEN), jnp.float32)], axis=0)  # [8, 40]
    return dict(wcol=wcol, w2=w2, w3p=w3p, b3=b3)


def maml_forward(x, prepped, *, max_tile=8192):
    """x: [N, 1] float32.  prepped: output of prepare_params().  Returns [N, 1]."""
    n = x.shape[0]
    x_row = x.astype(jnp.float32).reshape(1, n)   # contiguous metadata reshape, no copy

    # Batch tile (lanes): multiple of CHUNK, capped; keep it <= ceil(n/2) rounded up
    # so moderate N still gives >= 2 grid tiles for v7x's two TensorCores.
    max_tile = _round_up(max_tile, CHUNK)
    half = (n + 1) // 2
    tb = max(CHUNK, min(max_tile, _round_up(half, CHUNK)))
    n_chunks = tb // CHUNK
    grid = (pl.cdiv(n, tb),)

    kernel = functools.partial(_mlp_kernel, chunk=CHUNK, n_chunks=n_chunks)

    def wspec(shape):
        return pl.BlockSpec(shape, lambda i: (0, 0))   # resident across batch tiles

    out = pl.pallas_call(
        kernel,
        out_shape=jax.ShapeDtypeStruct((1, n), jnp.float32),
        grid=grid,
        in_specs=[
            pl.BlockSpec((1, tb), lambda i: (0, i)),   # x: batch-tiled on lanes
            wspec((HIDDEN, 3)),                        # packed [w1 | b1 | b2] columns
            wspec((HIDDEN, HIDDEN)),                   # w2
            wspec((8, HIDDEN)),                        # w3 padded to 8 rows
            wspec((1, 1)),                             # b3
        ],
        out_specs=pl.BlockSpec((1, tb), lambda i: (0, i)),
        compiler_params=pltpu.CompilerParams(
            dimension_semantics=("parallel",),
            vmem_limit_bytes=32 * 1024 * 1024,
        ),
    )(x_row, prepped["wcol"], prepped["w2"], prepped["w3p"], prepped["b3"])

    return out.reshape(n, 1)


def init_params(key):
    """Deterministic init matching nn.Linear shapes (uniform +/- 1/sqrt(fan_in))."""
    ks = jax.random.split(key, 6)

    def lin(kw, kb, out_f, in_f):
        bound = 1.0 / jnp.sqrt(in_f)
        w = jax.random.uniform(kw, (out_f, in_f), jnp.float32, -bound, bound)
        b = jax.random.uniform(kb, (out_f,), jnp.float32, -bound, bound)
        return w, b

    w1, b1 = lin(ks[0], ks[1], HIDDEN, 1)
    w2, b2 = lin(ks[2], ks[3], HIDDEN, HIDDEN)
    w3, b3 = lin(ks[4], ks[5], 1, HIDDEN)
    return dict(w1=w1, b1=b1, w2=w2, b2=b2, w3=w3, b3=b3)


if __name__ == "__main__":
    key = jax.random.PRNGKey(0)
    k_param, k_x = jax.random.split(key)
    params = init_params(k_param)
    prepped = prepare_params(params)

    # Small batch of scalar inputs in [-5, 5] (matches the X_MIN/X_MAX domain).
    x = jax.random.uniform(k_x, (8, 1), jnp.float32, -5.0, 5.0)
    out = maml_forward(x, prepped)
    jax.block_until_ready(out)

    # Pure-JAX reference (PyTorch semantics: y = x @ W.T + b).
    def ref(x, p):
        h = jnp.maximum(x @ p["w1"].T + p["b1"], 0.0)
        h = jnp.maximum(h @ p["w2"].T + p["b2"], 0.0)
        return h @ p["w3"].T + p["b3"]

    expected = ref(x, params)
    assert out.shape == (8, 1)
    assert jnp.allclose(out, expected, atol=1e-5, rtol=1e-5)

    # Larger batch exercising the multi-tile grid + partial-last-block path.
    x_big = jax.random.uniform(jax.random.PRNGKey(1), (3000, 1), jnp.float32, -5.0, 5.0)
    out_big = maml_forward(x_big, prepped)
    jax.block_until_ready(out_big)
    assert out_big.shape == (3000, 1)
    assert jnp.allclose(out_big, ref(x_big, params), atol=1e-5, rtol=1e-5)

    print("KERNEL_OK")
</pallas_src>

<mosaic_0001>
module attributes {stable_mosaic.version = 11 : i64} {
  func.func @_mlp_kernel(%arg0: i32, %arg1: memref<1x512xf32, #tpu.memory_space<vmem>>, %arg2: memref<40x3xf32, #tpu.memory_space<vmem>>, %arg3: memref<40x40xf32, #tpu.memory_space<vmem>>, %arg4: memref<8x40xf32, #tpu.memory_space<vmem>>, %arg5: memref<1x1xf32, #tpu.memory_space<vmem>>, %arg6: memref<1x512xf32, #tpu.memory_space<vmem>>) attributes {dimension_semantics = [#tpu.dimension_semantics<parallel>], iteration_bounds = array<i64: 1>, scalar_prefetch = 0 : i64, scratch_operands = 0 : i64, tpu.core_type = #tpu.core_type<tc>, window_params = [{transform_indices = @transform_0, window_bounds = array<i64: 1, 512>}, {pipeline_mode = #tpu.pipeline_mode<synchronous>, transform_indices = @transform_1, window_bounds = array<i64: 40, 3>}, {pipeline_mode = #tpu.pipeline_mode<synchronous>, transform_indices = @transform_2, window_bounds = array<i64: 40, 40>}, {pipeline_mode = #tpu.pipeline_mode<synchronous>, transform_indices = @transform_3, window_bounds = array<i64: 8, 40>}, {pipeline_mode = #tpu.pipeline_mode<synchronous>, transform_indices = @transform_4, window_bounds = array<i64: 1, 1>}, {transform_indices = @transform_5, window_bounds = array<i64: 1, 512>}]} {
    %c0 = arith.constant 0 : index
    %c0_0 = arith.constant 0 : index
    %0 = vector.load %arg2[%c0, %c0_0] : memref<40x3xf32, #tpu.memory_space<vmem>>, vector<40x1xf32>
    %c0_1 = arith.constant 0 : index
    %c1 = arith.constant 1 : index
    %1 = vector.load %arg2[%c0_1, %c1] : memref<40x3xf32, #tpu.memory_space<vmem>>, vector<40x1xf32>
    %c0_2 = arith.constant 0 : index
    %c2 = arith.constant 2 : index
    %2 = vector.load %arg2[%c0_2, %c2] : memref<40x3xf32, #tpu.memory_space<vmem>>, vector<40x1xf32>
    %c0_3 = arith.constant 0 : index
    %c0_4 = arith.constant 0 : index
    %3 = vector.load %arg3[%c0_3, %c0_4] : memref<40x40xf32, #tpu.memory_space<vmem>>, vector<40x40xf32>
    %c0_5 = arith.constant 0 : index
    %c0_6 = arith.constant 0 : index
    %4 = vector.load %arg4[%c0_5, %c0_6] : memref<8x40xf32, #tpu.memory_space<vmem>>, vector<8x40xf32>
    %c0_7 = arith.constant 0 : index
    %c0_8 = arith.constant 0 : index
    %5 = vector.load %arg5[%c0_7, %c0_8] : memref<1x1xf32, #tpu.memory_space<vmem>>, vector<1x1xf32>
    %c0_i32 = arith.constant 0 : i32
    %c512_i32 = arith.constant 512 : i32
    %6 = arith.muli %c0_i32, %c512_i32 : i32
    %7 = tpu.assume_multiple %6, 512 : i32
    %c0_9 = arith.constant 0 : index
    %8 = arith.index_cast %7 : i32 to index
    %9 = vector.load %arg1[%c0_9, %8] : memref<1x512xf32, #tpu.memory_space<vmem>>, vector<1x512xf32>
    %10 = vector.broadcast %0 : vector<40x1xf32> to vector<40x512xf32>
    %11 = vector.broadcast %9 : vector<1x512xf32> to vector<40x512xf32>
    %12 = arith.mulf %10, %11 : vector<40x512xf32>
    %13 = vector.broadcast %1 : vector<40x1xf32> to vector<40x512xf32>
    %14 = arith.addf %12, %13 : vector<40x512xf32>
    %cst = arith.constant 0.000000e+00 : f32
    %15 = vector.broadcast %cst : f32 to vector<40x512xf32>
    %16 = arith.maximumf %14, %15 : vector<40x512xf32>
    %cst_10 = arith.constant dense<0.000000e+00> : vector<40x512xf32>
    %17 = tpu.matmul %3, %16, %cst_10 {dimension_numbers = #tpu.dot_dimension_numbers<[1], [0], [0], [1], [0, 0, 1, 1], [], []>} : vector<40x40xf32>, vector<40x512xf32>, vector<40x512xf32> -> vector<40x512xf32>
    %18 = vector.broadcast %2 : vector<40x1xf32> to vector<40x512xf32>
    %19 = arith.addf %17, %18 : vector<40x512xf32>
    %cst_11 = arith.constant 0.000000e+00 : f32
    %20 = vector.broadcast %cst_11 : f32 to vector<40x512xf32>
    %21 = arith.maximumf %19, %20 : vector<40x512xf32>
    %cst_12 = arith.constant dense<0.000000e+00> : vector<8x512xf32>
    %22 = tpu.matmul %4, %21, %cst_12 {dimension_numbers = #tpu.dot_dimension_numbers<[1], [0], [0], [1], [0, 0, 1, 1], [], []>} : vector<8x40xf32>, vector<40x512xf32>, vector<8x512xf32> -> vector<8x512xf32>
    %23 = vector.extract_strided_slice %22 {offsets = [0, 0], sizes = [1, 512], strides = [1, 1]} : vector<8x512xf32> to vector<1x512xf32>
    %24 = vector.broadcast %5 : vector<1x1xf32> to vector<1x512xf32>
    %25 = arith.addf %23, %24 : vector<1x512xf32>
    %c0_13 = arith.constant 0 : index
    %26 = arith.index_cast %7 : i32 to index
    %27 = vector.load %arg6[%c0_13, %26] : memref<1x512xf32, #tpu.memory_space<vmem>>, vector<1x512xf32>
    tpu.vector_store %arg6[%c0_13, %26], %25 {strides = array<i32>} : memref<1x512xf32, #tpu.memory_space<vmem>>, vector<1x512xf32>,
    %c1_i32 = arith.constant 1 : i32
    return
  }
  func.func @transform_0(%arg0: i32) -> (i32, i32) {
    %c0_i32 = arith.constant 0 : i32
    %c0_i32_0 = arith.constant 0 : i32
    return %c0_i32, %arg0 : i32, i32
  }
  func.func @transform_1(%arg0: i32) -> (i32, i32) {
    %c0_i32 = arith.constant 0 : i32
    %c0_i32_0 = arith.constant 0 : i32
    %c0_i32_1 = arith.constant 0 : i32
    return %c0_i32, %c0_i32_0 : i32, i32
  }
  func.func @transform_2(%arg0: i32) -> (i32, i32) {
    %c0_i32 = arith.constant 0 : i32
    %c0_i32_0 = arith.constant 0 : i32
    %c0_i32_1 = arith.constant 0 : i32
    return %c0_i32, %c0_i32_0 : i32, i32
  }
  func.func @transform_3(%arg0: i32) -> (i32, i32) {
    %c0_i32 = arith.constant 0 : i32
    %c0_i32_0 = arith.constant 0 : i32
    %c0_i32_1 = arith.constant 0 : i32
    return %c0_i32, %c0_i32_0 : i32, i32
  }
  func.func @transform_4(%arg0: i32) -> (i32, i32) {
    %c0_i32 = arith.constant 0 : i32
    %c0_i32_0 = arith.constant 0 : i32
    %c0_i32_1 = arith.constant 0 : i32
    return %c0_i32, %c0_i32_0 : i32, i32
  }
  func.func @transform_5(%arg0: i32) -> (i32, i32) {
    %c0_i32 = arith.constant 0 : i32
    %c0_i32_0 = arith.constant 0 : i32
    return %c0_i32, %arg0 : i32, i32
  }
}

</mosaic_0001>

<llo_original>
// kernel: tpu_custom_call.1
$region0: #{tpu_custom_call.1}
  #allocation0 [shape = 'u32[]', space=smem, size = 0x4, offset = 0x4, fixed_abs, tag = 'smem constant byte address 0x4 - core index']
  #allocation1 [shape = 'u32[144,128]{1,0:T(1,128)}', space=vmem, size = 0x12000, scoped, tag = 'internal scratch']
  #allocation2 [shape = 'f32[1,1]{1,0:T(1,128)S(1)}', space=vmem, size = 0x200, scoped, tag = 'scoped memory for tpu_custom_call.1']
  %s0 = inlined_call_operand.vmem [shape: f32[1,8], index: 0, kind: input, shape index: {}]
  %s1 = inlined_call_operand.vmem [shape: f32[40,3], index: 1, kind: input, shape index: {}]
  %s2 = inlined_call_operand.vmem [shape: f32[40,40], index: 2, kind: input, shape index: {}]
  %s3 = inlined_call_operand.vmem [shape: f32[8,40], index: 3, kind: input, shape index: {}]
  %s4 = inlined_call_operand.<no memory space> [shape: f32[1,1], index: 4, kind: input, shape index: {}]
  %s5 = inlined_call_operand.hbm [shape: f32[1,8], index: 5, kind: output, shape index: {}]
  %s6 = sld [smem:[#allocation0]]
  $region30: #{tpu_custom_call.1} parent=0
    _
  %s8 = ssub.s32 1, %s6
  %s9 = scalar_select 0, %s8, %s6
  %v10 = vstv %s4
  %11 = vst [vmem:[#allocation2] sm:$0x1] %v10
  $region1: #{tpu_custom_call.1} parent=0
    #allocation3 [shape = 'u8[2048]{0}', space=vmem, size = 0x800, scoped, tag = 'output window, operand 0, single buffered']
    #allocation4 [shape = 's32[1]{0}', space=sflag, size = 0x4, scoped, tag = 'scoped memory for tpu_custom_call.1']
    %12 = vsyncpa [#allocation4], 0
    // Predicated region
    $region2: #{tpu_custom_call.1} parent=1 // pred_check
      _
    $region3: #{tpu_custom_call.1} parent=1 // pred_check_branch
      %14 = sbr.rel (0) target = $region5
    $region4: #{tpu_custom_call.1} parent=1 // pred_region
      _
    $region5: #{tpu_custom_call.1} parent=1 // pred_fallthru
      _
    // Predicated region
    $region6: #{tpu_custom_call.1} parent=1 // pred_check
      _
    $region7: #{tpu_custom_call.1} parent=1 // pred_check_branch
      %16 = sbr.rel (0) target = $region9
    $region8: #{tpu_custom_call.1} parent=1 // pred_region
      _
    $region9: #{tpu_custom_call.1} parent=1 // pred_fallthru
      _
    // Predicated region
    $region10: #{tpu_custom_call.1} parent=1 // pred_check
      _
    $region11: #{tpu_custom_call.1} parent=1 // pred_check_branch
      %18 = sbr.rel (0) target = $region13
    $region12: #{tpu_custom_call.1} parent=1 // pred_region
      _
    $region13: #{tpu_custom_call.1} parent=1 // pred_fallthru
      _
    // Predicated region
    $region14: #{tpu_custom_call.1} parent=1 // pred_check
      _
    $region15: #{tpu_custom_call.1} parent=1 // pred_check_branch
      %20 = sbr.rel (0) target = $region17
    $region16: #{tpu_custom_call.1} parent=1 // pred_region
      _
    $region17: #{tpu_custom_call.1} parent=1 // pred_fallthru
      _
    // Predicated region
    $region18: #{tpu_custom_call.1} parent=1 // pred_check
      _
    $region19: #{tpu_custom_call.1} parent=1 // pred_check_branch
      %22 = sbr.rel (0) target = $region21
    $region20: #{tpu_custom_call.1} parent=1 // pred_region
      _
    $region21: #{tpu_custom_call.1} parent=1 // pred_fallthru
      _
    %v23 = vld [vmem:[%s1] sm:$0xff]
    %v24 = vld [vmem:[%s1 + $0x8] sm:$0xff]
    %v25 = vld [vmem:[%s1 + $0x10] sm:$0xff]
    %v26 = vld [vmem:[%s1 + $0x18] sm:$0xff]
    %v27 = vld [vmem:[%s1 + $0x20] sm:$0xff]
    %v28 = vld [vmem:[%s2] sm:$0xff]
    %v29 = vld [vmem:[%s2 + $0x8] sm:$0xff]
    %v30 = vld [vmem:[%s2 + $0x10] sm:$0xff]
    %v31 = vld [vmem:[%s2 + $0x18] sm:$0xff]
    %v32 = vld [vmem:[%s2 + $0x20] sm:$0xff]
    %v33 = vld [vmem:[%s3] sm:$0xff]
    %v34 = vld [vmem:[#allocation2] sm:$0x1]
    %v35 = vld [vmem:[%s0] sm:$0xf]
    %37 = vset.pattern.permute.xlu0 0
    %38 = vperm.xlu0 %37, %v23
    %v39 = vpop.permute.xlu0 %38
    %42 = vset.pattern.permute.xlu0 0
    %43 = vperm.xlu0 %42, %v24
    %v44 = vpop.permute.xlu0 %43
    %47 = vset.pattern.permute.xlu0 0
    %48 = vperm.xlu0 %47, %v25
    %v49 = vpop.permute.xlu0 %48
    %52 = vset.pattern.permute.xlu0 0
    %53 = vperm.xlu0 %52, %v26
    %v54 = vpop.permute.xlu0 %53
    %57 = vset.pattern.permute.xlu0 0
    %58 = vperm.xlu0 %57, %v27
    %v59 = vpop.permute.xlu0 %58
    %v62 = vlaneseq
    %v63 = vshrl.u32 %v62, 7
    %v64 = vsub.s32 0, %v63
    %v65 = vrot.slane %v35, %v64
    %v66 = vlaneseq
    %v67 = vshrl.u32 %v66, 7
    %v68 = vsub.s32 1, %v67
    %v69 = vrot.slane %v35, %v68
    %v70 = vlaneseq
    %v71 = vshrl.u32 %v70, 7
    %v72 = vsub.s32 2, %v71
    %v73 = vrot.slane %v35, %v72
    %v74 = vlaneseq
    %v75 = vshrl.u32 %v74, 7
    %v76 = vsub.s32 3, %v75
    %v77 = vrot.slane %v35, %v76
    %v82 = vmul.f32 %v39, %v65
    %v83 = vmul.f32 %v39, %v69
    %v84 = vmul.f32 %v39, %v73
    %v85 = vmul.f32 %v39, %v77
    %v86 = vmul.f32 %v44, %v65
    %v87 = vmul.f32 %v44, %v69
    %v88 = vmul.f32 %v44, %v73
    %v89 = vmul.f32 %v44, %v77
    %v90 = vmul.f32 %v49, %v65
    %v91 = vmul.f32 %v49, %v69
    %v92 = vmul.f32 %v49, %v73
    %v93 = vmul.f32 %v49, %v77
    %v94 = vmul.f32 %v54, %v65
    %v95 = vmul.f32 %v54, %v69
    %v96 = vmul.f32 %v54, %v73
    %v97 = vmul.f32 %v54, %v77
    %v98 = vmul.f32 %v59, %v65
    %v99 = vmul.f32 %v59, %v69
    %v100 = vmul.f32 %v59, %v73
    %v101 = vmul.f32 %v59, %v77
    %102 = vset.pattern.permute.xlu0 1
    %103 = vperm.xlu0 %102, %v23
    %v104 = vpop.permute.xlu0 %103
    %106 = vset.pattern.permute.xlu0 1
    %107 = vperm.xlu0 %106, %v24
    %v108 = vpop.permute.xlu0 %107
    %110 = vset.pattern.permute.xlu0 1
    %111 = vperm.xlu0 %110, %v25
    %v112 = vpop.permute.xlu0 %111
    %114 = vset.pattern.permute.xlu0 1
    %115 = vperm.xlu0 %114, %v26
    %v116 = vpop.permute.xlu0 %115
    %118 = vset.pattern.permute.xlu0 1
    %119 = vperm.xlu0 %118, %v27
    %v120 = vpop.permute.xlu0 %119
    %v122 = vadd.f32 %v82, %v104
    %v123 = vadd.f32 %v83, %v104
    %v124 = vadd.f32 %v84, %v104
    %v125 = vadd.f32 %v85, %v104
    %v126 = vadd.f32 %v86, %v108
    %v127 = vadd.f32 %v87, %v108
    %v128 = vadd.f32 %v88, %v108
    %v129 = vadd.f32 %v89, %v108
    %v130 = vadd.f32 %v90, %v112
    %v131 = vadd.f32 %v91, %v112
    %v132 = vadd.f32 %v92, %v112
    %v133 = vadd.f32 %v93, %v112
    %v134 = vadd.f32 %v94, %v116
    %v135 = vadd.f32 %v95, %v116
    %v136 = vadd.f32 %v96, %v116
    %v137 = vadd.f32 %v97, %v116
    %v138 = vadd.f32 %v98, %v120
    %v139 = vadd.f32 %v99, %v120
    %v140 = vadd.f32 %v100, %v120
    %v141 = vadd.f32 %v101, %v120
    %v142 = vmax.f32 %v122, 0.0
    %v143 = vmax.f32 %v123, 0.0
    %v144 = vmax.f32 %v124, 0.0
    %v145 = vmax.f32 %v125, 0.0
    %v146 = vmax.f32 %v126, 0.0
    %v147 = vmax.f32 %v127, 0.0
    %v148 = vmax.f32 %v128, 0.0
    %v149 = vmax.f32 %v129, 0.0
    %v150 = vmax.f32 %v130, 0.0
    %v151 = vmax.f32 %v131, 0.0
    %v152 = vmax.f32 %v132, 0.0
    %v153 = vmax.f32 %v133, 0.0
    %v154 = vmax.f32 %v134, 0.0
    %v155 = vmax.f32 %v135, 0.0
    %v156 = vmax.f32 %v136, 0.0
    %v157 = vmax.f32 %v137, 0.0
    %v158 = vmax.f32 %v138, 0.0
    %v159 = vmax.f32 %v139, 0.0
    %v160 = vmax.f32 %v140, 0.0
    %v161 = vmax.f32 %v141, 0.0
    %162 = vset.pattern.permute.xlu0 2
    %163 = vperm.xlu0 %162, %v23
    %v164 = vpop.permute.xlu0 %163
    %166 = vset.pattern.permute.xlu0 2
    %167 = vperm.xlu0 %166, %v24
    %v168 = vpop.permute.xlu0 %167
    %170 = vset.pattern.permute.xlu0 2
    %171 = vperm.xlu0 %170, %v25
    %v172 = vpop.permute.xlu0 %171
    %174 = vset.pattern.permute.xlu0 2
    %175 = vperm.xlu0 %174, %v26
    %v176 = vpop.permute.xlu0 %175
    %178 = vset.pattern.permute.xlu0 2
    %179 = vperm.xlu0 %178, %v27
    %v180 = vpop.permute.xlu0 %179
    %vm182 = vcmask 326656
    %v184 = vsel %vm182, %v28, 0
    %v187 = vsel %vm182, %v29, 0
    %v190 = vsel %vm182, %v30, 0
    %v193 = vsel %vm182, %v31, 0
    %v196 = vsel %vm182, %v32, 0
    %198 = vmatprep.subr.mxu0 %v143
    %199 = vmatpush1.msra.mxu0 %v142
    %200 = vmatprep.subr.mxu0 %v147
    %201 = vmatpush1.msra.mxu0 %v146
    %202 = vmatprep.subr.mxu0 %v151
    %203 = vmatpush1.msra.mxu0 %v150
    %204 = vmatprep.subr.mxu0 %v155
    %205 = vmatpush1.msra.mxu0 %v154
    %206 = vmatprep.subr.mxu0 %v159
    %207 = vmatpush1.msra.mxu0 %v158
    %208 = vmatprep.subr.mxu0 0.0
    %209 = vmatpush1.msra.mxu0 0.0
    %210 = vmatprep.subr.mxu0 0.0
    %211 = vmatpush1.msra.mxu0 0.0
    %212 = vmatprep.subr.mxu0 0.0
    %213 = vmatpush1.msra.mxu0 0.0
    %214 = vmatprep.subr.mxu0 0.0
    %215 = vmatpush1.msra.mxu0 0.0
    %216 = vmatprep.subr.mxu0 0.0
    %217 = vmatpush1.msra.mxu0 0.0
    %218 = vmatprep.subr.mxu0 0.0
    %219 = vmatpush1.msra.mxu0 0.0
    %220 = vmatprep.subr.mxu0 0.0
    %221 = vmatpush1.msra.mxu0 0.0
    %222 = vmatprep.subr.mxu0 0.0
    %223 = vmatpush1.msra.mxu0 0.0
    %224 = vmatprep.subr.mxu0 0.0
    %225 = vmatpush1.msra.mxu0 0.0
    %226 = vmatprep.subr.mxu0 0.0
    %227 = vmatpush1.msra.mxu0 0.0
    %228 = vmatprep.subr.mxu0 0.0
    %229 = vmatpush1.msra.mxu0 0.0
    %230 = vmatprep.subr.mxu0 0.0
    %231 = vmatpush1.msra.mxu0 0.0
    %232 = vmatprep.subr.mxu0 0.0
    %233 = vmatpush1.msra.mxu0 0.0
    %234 = vmatprep.subr.mxu0 0.0
    %235 = vmatpush1.msra.mxu0 0.0
    %236 = vmatprep.subr.mxu0 0.0
    %237 = vmatpush1.msra.mxu0 0.0
    %238 = vmatprep.subr.mxu0 0.0
    %239 = vmatpush1.msra.mxu0 0.0
    %240 = vmatprep.subr.mxu0 0.0
    %241 = vmatpush1.msra.mxu0 0.0
    %242 = vmatprep.subr.mxu0 0.0
    %243 = vmatpush1.msra.mxu0 0.0
    %244 = vmatprep.subr.mxu0 0.0
    %245 = vmatpush1.msra.mxu0 0.0
    %246 = vmatprep.subr.mxu0 0.0
    %247 = vmatpush1.msra.mxu0 0.0
    %248 = vmatprep.subr.mxu0 0.0
    %249 = vmatpush1.msra.mxu0 0.0
    %250 = vmatprep.subr.mxu0 0.0
    %251 = vmatpush1.msra.mxu0 0.0
    %252 = vmatprep.subr.mxu0 0.0
    %253 = vmatpush1.msra.mxu0 0.0
    %254 = vmatprep.subr.mxu0 0.0
    %255 = vmatpush1.msra.mxu0 0.0
    %256 = vmatprep.subr.mxu0 0.0
    %257 = vmatpush1.msra.mxu0 0.0
    %258 = vmatprep.subr.mxu0 0.0
    %259 = vmatpush1.msra.mxu0 0.0
    %260 = vmatprep.subr.mxu0 0.0
    %261 = vmatpush1.msra.mxu0 0.0
    %262 = vmatprep.mubr.f32.mxu0 0.0
    %263 = vmatmul.mubr.f32.gmra.mrb[0].mxu0 %v184
    %v264 = vpop.f32.mrb[0].mxu0
    %v265 = vadd.f32 %v164, %v264
    %v266 = vpop.f32.mrb[0].mxu0
    %v267 = vadd.f32 %v164, %v266
    %268 = vmatprep.mubr.f32.mxu0 0.0
    %269 = vmatmul.mubr.f32.gmra.mrb[0].mxu0 %v187
    %v270 = vpop.f32.mrb[0].mxu0
    %v271 = vadd.f32 %v168, %v270
    %v272 = vpop.f32.mrb[0].mxu0
    %v273 = vadd.f32 %v168, %v272
    %274 = vmatprep.mubr.f32.mxu0 0.0
    %275 = vmatmul.mubr.f32.gmra.mrb[0].mxu0 %v190
    %v276 = vpop.f32.mrb[0].mxu0
    %v277 = vadd.f32 %v172, %v276
    %v278 = vpop.f32.mrb[0].mxu0
    %v279 = vadd.f32 %v172, %v278
    %280 = vmatprep.mubr.f32.mxu0 0.0
    %281 = vmatmul.mubr.f32.gmra.mrb[0].mxu0 %v193
    %v282 = vpop.f32.mrb[0].mxu0
    %v283 = vadd.f32 %v176, %v282
    %v284 = vpop.f32.mrb[0].mxu0
    %v285 = vadd.f32 %v176, %v284
    %286 = vmatprep.mubr.f32.mxu0 0.0
    %287 = vmatmul.mubr.f32.gmra.mrb[0].mxu0 %v196
    %v288 = vpop.f32.mrb[0].mxu0
    %v289 = vadd.f32 %v180, %v288
    %v290 = vpop.f32.mrb[0].mxu0
    %v291 = vadd.f32 %v180, %v290
    %292 = vdwg.mxu0
    %293 = vmatprep.subr.mxu0 %v145
    %294 = vmatpush1.msra.mxu0 %v144
    %295 = vmatprep.subr.mxu0 %v149
    %296 = vmatpush1.msra.mxu0 %v148
    %297 = vmatprep.subr.mxu0 %v153
    %298 = vmatpush1.msra.mxu0 %v152
    %299 = vmatprep.subr.mxu0 %v157
    %300 = vmatpush1.msra.mxu0 %v156
    %301 = vmatprep.subr.mxu0 %v161
    %302 = vmatpush1.msra.mxu0 %v160
    %303 = vmatprep.subr.mxu0 0.0
    %304 = vmatpush1.msra.mxu0 0.0
    %305 = vmatprep.subr.mxu0 0.0
    %306 = vmatpush1.msra.mxu0 0.0
    %307 = vmatprep.subr.mxu0 0.0
    %308 = vmatpush1.msra.mxu0 0.0
    %309 = vmatprep.subr.mxu0 0.0
    %310 = vmatpush1.msra.mxu0 0.0
    %311 = vmatprep.subr.mxu0 0.0
    %312 = vmatpush1.msra.mxu0 0.0
    %313 = vmatprep.subr.mxu0 0.0
    %314 = vmatpush1.msra.mxu0 0.0
    %315 = vmatprep.subr.mxu0 0.0
    %316 = vmatpush1.msra.mxu0 0.0
    %317 = vmatprep.subr.mxu0 0.0
    %318 = vmatpush1.msra.mxu0 0.0
    %319 = vmatprep.subr.mxu0 0.0
    %320 = vmatpush1.msra.mxu0 0.0
    %321 = vmatprep.subr.mxu0 0.0
    %322 = vmatpush1.msra.mxu0 0.0
    %323 = vmatprep.subr.mxu0 0.0
    %324 = vmatpush1.msra.mxu0 0.0
    %325 = vmatprep.subr.mxu0 0.0
    %326 = vmatpush1.msra.mxu0 0.0
    %327 = vmatprep.subr.mxu0 0.0
    %328 = vmatpush1.msra.mxu0 0.0
    %329 = vmatprep.subr.mxu0 0.0
    %330 = vmatpush1.msra.mxu0 0.0
    %331 = vmatprep.subr.mxu0 0.0
    %332 = vmatpush1.msra.mxu0 0.0
    %333 = vmatprep.subr.mxu0 0.0
    %334 = vmatpush1.msra.mxu0 0.0
    %335 = vmatprep.subr.mxu0 0.0
    %336 = vmatpush1.msra.mxu0 0.0
    %337 = vmatprep.subr.mxu0 0.0
    %338 = vmatpush1.msra.mxu0 0.0
    %339 = vmatprep.subr.mxu0 0.0
    %340 = vmatpush1.msra.mxu0 0.0
    %341 = vmatprep.subr.mxu0 0.0
    %342 = vmatpush1.msra.mxu0 0.0
    %343 = vmatprep.subr.mxu0 0.0
    %344 = vmatpush1.msra.mxu0 0.0
    %345 = vmatprep.subr.mxu0 0.0
    %346 = vmatpush1.msra.mxu0 0.0
    %347 = vmatprep.subr.mxu0 0.0
    %348 = vmatpush1.msra.mxu0 0.0
    %349 = vmatprep.subr.mxu0 0.0
    %350 = vmatpush1.msra.mxu0 0.0
    %351 = vmatprep.subr.mxu0 0.0
    %352 = vmatpush1.msra.mxu0 0.0
    %353 = vmatprep.subr.mxu0 0.0
    %354 = vmatpush1.msra.mxu0 0.0
    %355 = vmatprep.subr.mxu0 0.0
    %356 = vmatpush1.msra.mxu0 0.0
    %357 = vmatprep.mubr.f32.mxu0 0.0
    %358 = vmatmul.mubr.f32.gmra.mrb[0].mxu0 %v184
    %v359 = vpop.f32.mrb[0].mxu0
    %v360 = vadd.f32 %v164, %v359
    %v361 = vpop.f32.mrb[0].mxu0
    %v362 = vadd.f32 %v164, %v361
    %363 = vmatprep.mubr.f32.mxu0 0.0
    %364 = vmatmul.mubr.f32.gmra.mrb[0].mxu0 %v187
    %v365 = vpop.f32.mrb[0].mxu0
    %v366 = vadd.f32 %v168, %v365
    %v367 = vpop.f32.mrb[0].mxu0
    %v368 = vadd.f32 %v168, %v367
    %369 = vmatprep.mubr.f32.mxu0 0.0
    %370 = vmatmul.mubr.f32.gmra.mrb[0].mxu0 %v190
    %v371 = vpop.f32.mrb[0].mxu0
    %v372 = vadd.f32 %v172, %v371
    %v373 = vpop.f32.mrb[0].mxu0
    %v374 = vadd.f32 %v172, %v373
    %375 = vmatprep.mubr.f32.mxu0 0.0
    %376 = vmatmul.mubr.f32.gmra.mrb[0].mxu0 %v193
    %v377 = vpop.f32.mrb[0].mxu0
    %v378 = vadd.f32 %v176, %v377
    %v379 = vpop.f32.mrb[0].mxu0
    %v380 = vadd.f32 %v176, %v379
    %381 = vmatprep.mubr.f32.mxu0 0.0
    %382 = vmatmul.mubr.f32.gmra.mrb[0].mxu0 %v196
    %v383 = vpop.f32.mrb[0].mxu0
    %v384 = vadd.f32 %v180, %v383
    %v385 = vpop.f32.mrb[0].mxu0
    %v386 = vadd.f32 %v180, %v385
    %387 = vdwg.mxu0
    %v388 = vmax.f32 %v265, 0.0
    %v389 = vmax.f32 %v267, 0.0
    %v390 = vmax.f32 %v360, 0.0
    %v391 = vmax.f32 %v362, 0.0
    %v392 = vmax.f32 %v271, 0.0
    %v393 = vmax.f32 %v273, 0.0
    %v394 = vmax.f32 %v366, 0.0
    %v395 = vmax.f32 %v368, 0.0
    %v396 = vmax.f32 %v277, 0.0
    %v397 = vmax.f32 %v279, 0.0
    %v398 = vmax.f32 %v372, 0.0
    %v399 = vmax.f32 %v374, 0.0
    %v400 = vmax.f32 %v283, 0.0
    %v401 = vmax.f32 %v285, 0.0
    %v402 = vmax.f32 %v378, 0.0
    %v403 = vmax.f32 %v380, 0.0
    %v404 = vmax.f32 %v289, 0.0
    %v405 = vmax.f32 %v291, 0.0
    %v406 = vmax.f32 %v384, 0.0
    %v407 = vmax.f32 %v386, 0.0
    %v409 = vsel %vm182, %v33, 0
    %411 = vmatprep.subr.mxu0 %v389
    %412 = vmatpush1.msra.mxu0 %v388
    %413 = vmatprep.subr.mxu0 %v393
    %414 = vmatpush1.msra.mxu0 %v392
    %415 = vmatprep.subr.mxu0 %v397
    %416 = vmatpush1.msra.mxu0 %v396
    %417 = vmatprep.subr.mxu0 %v401
    %418 = vmatpush1.msra.mxu0 %v400
    %419 = vmatprep.subr.mxu0 %v405
    %420 = vmatpush1.msra.mxu0 %v404
    %421 = vmatprep.subr.mxu0 0.0
    %422 = vmatpush1.msra.mxu0 0.0
    %423 = vmatprep.subr.mxu0 0.0
    %424 = vmatpush1.msra.mxu0 0.0
    %425 = vmatprep.subr.mxu0 0.0
    %426 = vmatpush1.msra.mxu0 0.0
    %427 = vmatprep.subr.mxu0 0.0
    %428 = vmatpush1.msra.mxu0 0.0
    %429 = vmatprep.subr.mxu0 0.0
    %430 = vmatpush1.msra.mxu0 0.0
    %431 = vmatprep.subr.mxu0 0.0
    %432 = vmatpush1.msra.mxu0 0.0
    %433 = vmatprep.subr.mxu0 0.0
    %434 = vmatpush1.msra.mxu0 0.0
    %435 = vmatprep.subr.mxu0 0.0
    %436 = vmatpush1.msra.mxu0 0.0
    %437 = vmatprep.subr.mxu0 0.0
    %438 = vmatpush1.msra.mxu0 0.0
    %439 = vmatprep.subr.mxu0 0.0
    %440 = vmatpush1.msra.mxu0 0.0
    %441 = vmatprep.subr.mxu0 0.0
    %442 = vmatpush1.msra.mxu0 0.0
    %443 = vmatprep.subr.mxu0 0.0
    %444 = vmatpush1.msra.mxu0 0.0
    %445 = vmatprep.subr.mxu0 0.0
    %446 = vmatpush1.msra.mxu0 0.0
    %447 = vmatprep.subr.mxu0 0.0
    %448 = vmatpush1.msra.mxu0 0.0
    %449 = vmatprep.subr.mxu0 0.0
    %450 = vmatpush1.msra.mxu0 0.0
    %451 = vmatprep.subr.mxu0 0.0
    %452 = vmatpush1.msra.mxu0 0.0
    %453 = vmatprep.subr.mxu0 0.0
    %454 = vmatpush1.msra.mxu0 0.0
    %455 = vmatprep.subr.mxu0 0.0
    %456 = vmatpush1.msra.mxu0 0.0
    %457 = vmatprep.subr.mxu0 0.0
    %458 = vmatpush1.msra.mxu0 0.0
    %459 = vmatprep.subr.mxu0 0.0
    %460 = vmatpush1.msra.mxu0 0.0
    %461 = vmatprep.subr.mxu0 0.0
    %462 = vmatpush1.msra.mxu0 0.0
    %463 = vmatprep.subr.mxu0 0.0
    %464 = vmatpush1.msra.mxu0 0.0
    %465 = vmatprep.subr.mxu0 0.0
    %466 = vmatpush1.msra.mxu0 0.0
    %467 = vmatprep.subr.mxu0 0.0
    %468 = vmatpush1.msra.mxu0 0.0
    %469 = vmatprep.subr.mxu0 0.0
    %470 = vmatpush1.msra.mxu0 0.0
    %471 = vmatprep.subr.mxu0 0.0
    %472 = vmatpush1.msra.mxu0 0.0
    %473 = vmatprep.subr.mxu0 0.0
    %474 = vmatpush1.msra.mxu0 0.0
    %475 = vmatprep.mubr.f32.mxu0 0.0
    %476 = vmatmul.mubr.f32.gmra.mrb[0].mxu0 %v409
    %v477 = vpop.f32.mrb[0].mxu0
    %v478 = vadd.f32 0.0, %v477
    %v479 = vpop.f32.mrb[0].mxu0
    %v480 = vadd.f32 0.0, %v479
    %481 = vdwg.mxu0
    %482 = vmatprep.subr.mxu0 %v391
    %483 = vmatpush1.msra.mxu0 %v390
    %484 = vmatprep.subr.mxu0 %v395
    %485 = vmatpush1.msra.mxu0 %v394
    %486 = vmatprep.subr.mxu0 %v399
    %487 = vmatpush1.msra.mxu0 %v398
    %488 = vmatprep.subr.mxu0 %v403
    %489 = vmatpush1.msra.mxu0 %v402
    %490 = vmatprep.subr.mxu0 %v407
    %491 = vmatpush1.msra.mxu0 %v406
    %492 = vmatprep.subr.mxu0 0.0
    %493 = vmatpush1.msra.mxu0 0.0
    %494 = vmatprep.subr.mxu0 0.0
    %495 = vmatpush1.msra.mxu0 0.0
    %496 = vmatprep.subr.mxu0 0.0
    %497 = vmatpush1.msra.mxu0 0.0
    %498 = vmatprep.subr.mxu0 0.0
    %499 = vmatpush1.msra.mxu0 0.0
    %500 = vmatprep.subr.mxu0 0.0
    %501 = vmatpush1.msra.mxu0 0.0
    %502 = vmatprep.subr.mxu0 0.0
    %503 = vmatpush1.msra.mxu0 0.0
    %504 = vmatprep.subr.mxu0 0.0
    %505 = vmatpush1.msra.mxu0 0.0
    %506 = vmatprep.subr.mxu0 0.0
    %507 = vmatpush1.msra.mxu0 0.0
    %508 = vmatprep.subr.mxu0 0.0
    %509 = vmatpush1.msra.mxu0 0.0
    %510 = vmatprep.subr.mxu0 0.0
    %511 = vmatpush1.msra.mxu0 0.0
    %512 = vmatprep.subr.mxu0 0.0
    %513 = vmatpush1.msra.mxu0 0.0
    %514 = vmatprep.subr.mxu0 0.0
    %515 = vmatpush1.msra.mxu0 0.0
    %516 = vmatprep.subr.mxu0 0.0
    %517 = vmatpush1.msra.mxu0 0.0
    %518 = vmatprep.subr.mxu0 0.0
    %519 = vmatpush1.msra.mxu0 0.0
    %520 = vmatprep.subr.mxu0 0.0
    %521 = vmatpush1.msra.mxu0 0.0
    %522 = vmatprep.subr.mxu0 0.0
    %523 = vmatpush1.msra.mxu0 0.0
    %524 = vmatprep.subr.mxu0 0.0
    %525 = vmatpush1.msra.mxu0 0.0
    %526 = vmatprep.subr.mxu0 0.0
    %527 = vmatpush1.msra.mxu0 0.0
    %528 = vmatprep.subr.mxu0 0.0
    %529 = vmatpush1.msra.mxu0 0.0
    %530 = vmatprep.subr.mxu0 0.0
    %531 = vmatpush1.msra.mxu0 0.0
    %532 = vmatprep.subr.mxu0 0.0
    %533 = vmatpush1.msra.mxu0 0.0
    %534 = vmatprep.subr.mxu0 0.0
    %535 = vmatpush1.msra.mxu0 0.0
    %536 = vmatprep.subr.mxu0 0.0
    %537 = vmatpush1.msra.mxu0 0.0
    %538 = vmatprep.subr.mxu0 0.0
    %539 = vmatpush1.msra.mxu0 0.0
    %540 = vmatprep.subr.mxu0 0.0
    %541 = vmatpush1.msra.mxu0 0.0
    %542 = vmatprep.subr.mxu0 0.0
    %543 = vmatpush1.msra.mxu0 0.0
    %544 = vmatprep.subr.mxu0 0.0
    %545 = vmatpush1.msra.mxu0 0.0
    %546 = vmatprep.mubr.f32.mxu0 0.0
    %547 = vmatmul.mubr.f32.gmra.mrb[0].mxu0 %v409
    %v548 = vpop.f32.mrb[0].mxu0
    %v549 = vadd.f32 0.0, %v548
    %v550 = vpop.f32.mrb[0].mxu0
    %v551 = vadd.f32 0.0, %v550
    %552 = vdwg.mxu0
    %554 = vset.pattern.permute.xlu0 0
    %555 = vperm.xlu0 %554, %v34
    %v556 = vpop.permute.xlu0 %555
    %v558 = vlaneseq
    %v559 = vshrl.u32 %v558, 7
    %v560 = vsub.s32 0, %v559
    %v561 = vrot.slane %v556, %v560
    %v562 = vadd.f32 %v478, %v561
    %v563 = vadd.f32 %v480, %v561
    %v564 = vadd.f32 %v549, %v561
    %v565 = vadd.f32 %v551, %v561
    %v570 = vcombine.low %v562, %v563
    %v571 = vcombine.low %v564, %v565
    %v573 = vunpack.c.l.s4 1966171168
    %v574 = vunpack.c.0.s8 %v573
    %v575 = vlaneseq
    %v576 = vshrl.u32 %v575, 7
    %v577 = vsub.s32 %v574, %v576
    %v578 = vrot.slane %v570, %v577
    %v580 = vunpack.c.l.s4 1966171168
    %v581 = vunpack.c.0.s8 %v580
    %v582 = vlaneseq
    %v583 = vshrl.u32 %v582, 7
    %v584 = vsub.s32 %v581, %v583
    %v585 = vrot.slane %v571, %v584
    %v586 = vcombine.low %v578, %v585
    %v588 = vunpack.c.l.s4 1966171168
    %v589 = vunpack.c.0.s8 %v588
    %v590 = vlaneseq
    %v591 = vshrl.u32 %v590, 7
    %v592 = vsub.s32 %v589, %v591
    %v593 = vrot.slane %v586, %v592
    %v595 = vlaneseq
    %vm596 = vcmp.ge.s32.totalorder %v595, 0
    %vm597 = vcmp.lt.s32.totalorder %v595, 512
    %vm598 = vmand %vm596, %vm597
    %599 = vst.msk [vmem:[#allocation3] sm:$0xf] %vm598, %v593
    // Predicated region
    $region22: #{tpu_custom_call.1} parent=1 // pred_check
      _
    $region23: #{tpu_custom_call.1} parent=1 // pred_check_branch
      %601 = sbr.rel (0) target = $region25
    $region24: #{tpu_custom_call.1} parent=1 // pred_region
      %s603 = ssub.s32 64, 16
      %604 = vsyncadd [#allocation4], %s603
      %s606 = sshll.u32 [#allocation3], 4
      %s607 = int_to_ptr.vmem [resolvable:$true] %s606
      %609 = dma.vmem_to_hbm [thread:$0]  %s607, 16, %s5, [#allocation4]
    $region25: #{tpu_custom_call.1} parent=1 // pred_fallthru
      _
    // Predicated region
    $region26: #{tpu_custom_call.1} parent=1 // pred_check
      _
    $region27: #{tpu_custom_call.1} parent=1 // pred_check_branch
      %611 = sbr.rel (0) target = $region29
    $region28: #{tpu_custom_call.1} parent=1 // pred_region
      %612 = dma.done [#allocation4], 64
    $region29: #{tpu_custom_call.1} parent=1 // pred_fallthru
      _
    %613 = vsyncpa [#allocation4], 1

</llo_original>
